<compile_context>
chip_gen: v7x
topology: tpu7x:2x2x1
jax: 0.10.0
libtpu: 0.0.40
codegen_flags: <defaults>
</compile_context>

<pallas_src>
import jax
import jax.numpy as jnp
from jax import lax
from jax.experimental import pallas as pl
from jax.experimental.pallas import tpu as pltpu

NEG_SLOPE = 0.01      # PyTorch F.leaky_relu default negative_slope
LANE = 128
SUBLANE = 8


def _leaky_relu(x):
    # max(x, a*x) == leaky_relu(x) for 0 < a < 1 (single VALU max).
    return jnp.maximum(x, NEG_SLOPE * x)


def _round_up(n, m):
    return ((n + m - 1) // m) * m


def _pad2(a, rows, cols):
    r, c = a.shape
    return jnp.pad(a, ((0, rows - r), (0, cols - c)))


def dqn_kernel(x_ref,
               w1_ref, b1_ref, w2_ref, b2_ref, w3_ref, b3_ref,
               w4_ref, b4_ref, w5_ref, b5_ref,
               o_ref):
    """Whole MLP for one batch tile in one grid step.

    x_ref : (TB, in_size) f32   -- streamed per grid step
    wN    : bf16, lane-padded   -- resident (constant index_map)
    bN    : f32,  lane-padded   -- resident
    w5    : (8, H_PAD) bf16     -- row 0 is the real fc5 weight row, rest 0
    o_ref : (1, 1, TB) f32      -- lane-dense q-values for this tile
    """
    h = x_ref[...]
    for w_ref, b_ref in ((w1_ref, b1_ref), (w2_ref, b2_ref),
                         (w3_ref, b3_ref), (w4_ref, b4_ref)):
        # bf16 x bf16 -> f32 accumulate on the MXU; activation in f32 on VPU.
        a = jnp.dot(h.astype(jnp.bfloat16), w_ref[...],
                    preferred_element_type=jnp.float32) + b_ref[...]
        h = _leaky_relu(a)

    # Final 1-unit layer as an NT matmul (contract the hidden/lane dim of both
    # operands): result is (8, TB) with batch along lanes -> lane-dense store.
    y = lax.dot_general(w5_ref[...], h.astype(jnp.bfloat16),
                        dimension_numbers=(((1,), (1,)), ((), ())),
                        preferred_element_type=jnp.float32)
    o_ref[0] = (y[0:1, :] + b5_ref[...]).astype(o_ref.dtype)


def prepare_params(params):
    """Pad / transpose / cast the parameters ONCE (call at init or whenever the
    network weights change), not on every forward call."""
    (w1, b1), (w2, b2), (w3, b3), (w4, b4), (w5, b5) = params
    in_size, hidden = w1.shape
    h_pad = max(LANE, _round_up(hidden, LANE))
    bf = jnp.bfloat16

    flat = [
        _pad2(w1, in_size, h_pad).astype(bf),
        _pad2(b1, 1, h_pad),                       # padded bias cols are 0 ->
        _pad2(w2, h_pad, h_pad).astype(bf),        # padded lanes stay exactly 0
        _pad2(b2, 1, h_pad),                       # through leaky_relu.
        _pad2(w3, h_pad, h_pad).astype(bf),
        _pad2(b3, 1, h_pad),
        _pad2(w4, h_pad, h_pad).astype(bf),
        _pad2(b4, 1, h_pad),
        _pad2(w5.T, SUBLANE, h_pad).astype(bf),    # (hidden,1) -> (1,hidden) row, 8 sublanes
        b5,                                        # (1, 1) f32
    ]
    meta = dict(in_size=int(in_size), hidden=int(hidden), h_pad=int(h_pad))
    return meta, flat


def dqn_forward(x, prepared, *, batch_tile=1024):
    """x: (B, in_size) f32. prepared: output of prepare_params()."""
    meta, flat = prepared
    in_size, h_pad = meta["in_size"], meta["h_pad"]
    B = x.shape[0]
    assert x.shape[1] == in_size

    # Batch-tile selection: big tiles amortize per-grid-step overhead, but keep
    # >= 2 grid steps when possible so the parallel axis can use both v7x TCs.
    rows = _round_up(B, SUBLANE)
    tb = min(batch_tile, rows)
    if rows // tb < 2 and rows >= 2 * SUBLANE:
        tb = _round_up((rows + 1) // 2, SUBLANE)
    b_pad = _round_up(rows, tb)
    n_tiles = b_pad // tb

    # Only the batch dim is padded; the feature dim stays at in_size (a
    # full-extent last block dim is legal; Mosaic handles the short contraction).
    xp = x if b_pad == B else jnp.pad(x, ((0, b_pad - B), (0, 0)))

    def resident(a):
        # Full-array block + constant index_map -> stays in VMEM across tiles.
        return pl.BlockSpec(a.shape, lambda i: (0,) * a.ndim)

    flops = 2 * b_pad * (in_size * h_pad + 3 * h_pad * h_pad + SUBLANE * h_pad)
    bytes_accessed = (4 * (xp.size + b_pad)
                      + sum(int(a.size) * a.dtype.itemsize for a in flat))
    cost = pl.CostEstimate(flops=int(flops), transcendentals=0,
                           bytes_accessed=int(bytes_accessed))

    out = pl.pallas_call(
        dqn_kernel,
        out_shape=jax.ShapeDtypeStruct((n_tiles, 1, tb), jnp.float32),
        grid_spec=pl.GridSpec(
            grid=(n_tiles,),
            in_specs=[pl.BlockSpec((tb, in_size), lambda i: (i, 0))]
                     + [resident(a) for a in flat],
            out_specs=pl.BlockSpec((1, 1, tb), lambda i: (i, 0, 0)),
        ),
        compiler_params=pltpu.CompilerParams(
            dimension_semantics=("parallel",),
        ),
        cost_estimate=cost,
    )(xp, *flat)

    # (n_tiles, 1, tb): tile i, lane j  <->  batch row i*tb + j.
    return out.reshape(-1)[:B].reshape(B, 1)


def init_params(key, in_size, hidden):
    """Deterministic synthetic init. Weights stored as (in, out), bias (1, out)."""
    sizes = [(in_size, hidden), (hidden, hidden), (hidden, hidden),
             (hidden, hidden), (hidden, 1)]
    params = []
    for fin, fout in sizes:
        kw, kb, key = jax.random.split(key, 3)
        scale = 1.0 / jnp.sqrt(jnp.float32(fin))   # matches torch Linear bound
        w = jax.random.uniform(kw, (fin, fout), jnp.float32, -scale, scale)
        b = jax.random.uniform(kb, (1, fout), jnp.float32, -scale, scale)
        params.append((w, b))
    return params


def dqn_reference(x, params):
    h = x
    for w, b in params[:-1]:
        h = jax.nn.leaky_relu(h @ w + b, NEG_SLOPE)
    w, b = params[-1]
    return h @ w + b


if __name__ == "__main__":
    key = jax.random.PRNGKey(0)
    B, IN_SIZE, HIDDEN = 8, 16, 32

    kx, kp = jax.random.split(key)
    x = jax.random.normal(kx, (B, IN_SIZE), jnp.float32)
    params = init_params(kp, IN_SIZE, HIDDEN)
    prepared = prepare_params(params)   # weight padding hoisted out of forward

    out = jax.block_until_ready(dqn_forward(x, prepared))
    ref = dqn_reference(x, params)
    assert out.shape == (B, 1), out.shape
    # bf16 MXU operands with f32 accumulation -> tolerance loosened vs pure f32.
    assert jnp.allclose(out, ref, atol=5e-2, rtol=5e-2), (out, ref)

    # Also exercise the multi-tile (lane-dense output across >1 grid steps) path.
    B2 = 64
    x2 = jax.random.normal(jax.random.PRNGKey(1), (B2, IN_SIZE), jnp.float32)
    out2 = jax.block_until_ready(dqn_forward(x2, prepared))
    ref2 = dqn_reference(x2, params)
    assert out2.shape == (B2, 1), out2.shape
    assert jnp.allclose(out2, ref2, atol=5e-2, rtol=5e-2), (out2, ref2)

    print("KERNEL_OK")
</pallas_src>

<mosaic_0001>
module attributes {stable_mosaic.version = 11 : i64} {
  func.func @dqn_kernel(%arg0: i32, %arg1: memref<8x16xf32, #tpu.memory_space<vmem>>, %arg2: memref<16x128xbf16, #tpu.memory_space<vmem>>, %arg3: memref<1x128xf32, #tpu.memory_space<vmem>>, %arg4: memref<128x128xbf16, #tpu.memory_space<vmem>>, %arg5: memref<1x128xf32, #tpu.memory_space<vmem>>, %arg6: memref<128x128xbf16, #tpu.memory_space<vmem>>, %arg7: memref<1x128xf32, #tpu.memory_space<vmem>>, %arg8: memref<128x128xbf16, #tpu.memory_space<vmem>>, %arg9: memref<1x128xf32, #tpu.memory_space<vmem>>, %arg10: memref<8x128xbf16, #tpu.memory_space<vmem>>, %arg11: memref<1x1xf32, #tpu.memory_space<vmem>>, %arg12: memref<1x1x8xf32, #tpu.memory_space<vmem>>) attributes {dimension_semantics = [#tpu.dimension_semantics<parallel>], iteration_bounds = array<i64: 1>, scalar_prefetch = 0 : i64, scratch_operands = 0 : i64, tpu.core_type = #tpu.core_type<tc>, window_params = [{transform_indices = @transform_0, window_bounds = array<i64: 8, 16>}, {pipeline_mode = #tpu.pipeline_mode<synchronous>, transform_indices = @transform_1, window_bounds = array<i64: 16, 128>}, {pipeline_mode = #tpu.pipeline_mode<synchronous>, transform_indices = @transform_2, window_bounds = array<i64: 1, 128>}, {pipeline_mode = #tpu.pipeline_mode<synchronous>, transform_indices = @transform_3, window_bounds = array<i64: 128, 128>}, {pipeline_mode = #tpu.pipeline_mode<synchronous>, transform_indices = @transform_4, window_bounds = array<i64: 1, 128>}, {pipeline_mode = #tpu.pipeline_mode<synchronous>, transform_indices = @transform_5, window_bounds = array<i64: 128, 128>}, {pipeline_mode = #tpu.pipeline_mode<synchronous>, transform_indices = @transform_6, window_bounds = array<i64: 1, 128>}, {pipeline_mode = #tpu.pipeline_mode<synchronous>, transform_indices = @transform_7, window_bounds = array<i64: 128, 128>}, {pipeline_mode = #tpu.pipeline_mode<synchronous>, transform_indices = @transform_8, window_bounds = array<i64: 1, 128>}, {pipeline_mode = #tpu.pipeline_mode<synchronous>, transform_indices = @transform_9, window_bounds = array<i64: 8, 128>}, {pipeline_mode = #tpu.pipeline_mode<synchronous>, transform_indices = @transform_10, window_bounds = array<i64: 1, 1>}, {transform_indices = @transform_11, window_bounds = array<i64: 1, 1, 8>}]} {
    %c0 = arith.constant 0 : index
    %c0_0 = arith.constant 0 : index
    %0 = vector.load %arg1[%c0, %c0_0] : memref<8x16xf32, #tpu.memory_space<vmem>>, vector<8x16xf32>
    %1 = arith.truncf %0 : vector<8x16xf32> to vector<8x16xbf16>
    %c0_1 = arith.constant 0 : index
    %c0_2 = arith.constant 0 : index
    %2 = vector.load %arg2[%c0_1, %c0_2] : memref<16x128xbf16, #tpu.memory_space<vmem>>, vector<16x128xbf16>
    %cst = arith.constant dense<0.000000e+00> : vector<8x128xf32>
    %3 = tpu.matmul %1, %2, %cst {dimension_numbers = #tpu.dot_dimension_numbers<[1], [0], [0], [1], [0, 0, 1, 1], [], []>} : vector<8x16xbf16>, vector<16x128xbf16>, vector<8x128xf32> -> vector<8x128xf32>
    %c0_3 = arith.constant 0 : index
    %c0_4 = arith.constant 0 : index
    %4 = vector.load %arg3[%c0_3, %c0_4] : memref<1x128xf32, #tpu.memory_space<vmem>>, vector<1x128xf32>
    %5 = vector.broadcast %4 : vector<1x128xf32> to vector<8x128xf32>
    %6 = arith.addf %3, %5 : vector<8x128xf32>
    %cst_5 = arith.constant 0.00999999977 : f32
    %7 = vector.broadcast %cst_5 : f32 to vector<8x128xf32>
    %8 = arith.mulf %7, %6 : vector<8x128xf32>
    %9 = arith.maximumf %6, %8 : vector<8x128xf32>
    %10 = arith.truncf %9 : vector<8x128xf32> to vector<8x128xbf16>
    %c0_6 = arith.constant 0 : index
    %c0_7 = arith.constant 0 : index
    %11 = vector.load %arg4[%c0_6, %c0_7] : memref<128x128xbf16, #tpu.memory_space<vmem>>, vector<128x128xbf16>
    %cst_8 = arith.constant dense<0.000000e+00> : vector<8x128xf32>
    %12 = tpu.matmul %10, %11, %cst_8 {dimension_numbers = #tpu.dot_dimension_numbers<[1], [0], [0], [1], [0, 0, 1, 1], [], []>} : vector<8x128xbf16>, vector<128x128xbf16>, vector<8x128xf32> -> vector<8x128xf32>
    %c0_9 = arith.constant 0 : index
    %c0_10 = arith.constant 0 : index
    %13 = vector.load %arg5[%c0_9, %c0_10] : memref<1x128xf32, #tpu.memory_space<vmem>>, vector<1x128xf32>
    %14 = vector.broadcast %13 : vector<1x128xf32> to vector<8x128xf32>
    %15 = arith.addf %12, %14 : vector<8x128xf32>
    %cst_11 = arith.constant 0.00999999977 : f32
    %16 = vector.broadcast %cst_11 : f32 to vector<8x128xf32>
    %17 = arith.mulf %16, %15 : vector<8x128xf32>
    %18 = arith.maximumf %15, %17 : vector<8x128xf32>
    %19 = arith.truncf %18 : vector<8x128xf32> to vector<8x128xbf16>
    %c0_12 = arith.constant 0 : index
    %c0_13 = arith.constant 0 : index
    %20 = vector.load %arg6[%c0_12, %c0_13] : memref<128x128xbf16, #tpu.memory_space<vmem>>, vector<128x128xbf16>
    %cst_14 = arith.constant dense<0.000000e+00> : vector<8x128xf32>
    %21 = tpu.matmul %19, %20, %cst_14 {dimension_numbers = #tpu.dot_dimension_numbers<[1], [0], [0], [1], [0, 0, 1, 1], [], []>} : vector<8x128xbf16>, vector<128x128xbf16>, vector<8x128xf32> -> vector<8x128xf32>
    %c0_15 = arith.constant 0 : index
    %c0_16 = arith.constant 0 : index
    %22 = vector.load %arg7[%c0_15, %c0_16] : memref<1x128xf32, #tpu.memory_space<vmem>>, vector<1x128xf32>
    %23 = vector.broadcast %22 : vector<1x128xf32> to vector<8x128xf32>
    %24 = arith.addf %21, %23 : vector<8x128xf32>
    %cst_17 = arith.constant 0.00999999977 : f32
    %25 = vector.broadcast %cst_17 : f32 to vector<8x128xf32>
    %26 = arith.mulf %25, %24 : vector<8x128xf32>
    %27 = arith.maximumf %24, %26 : vector<8x128xf32>
    %28 = arith.truncf %27 : vector<8x128xf32> to vector<8x128xbf16>
    %c0_18 = arith.constant 0 : index
    %c0_19 = arith.constant 0 : index
    %29 = vector.load %arg8[%c0_18, %c0_19] : memref<128x128xbf16, #tpu.memory_space<vmem>>, vector<128x128xbf16>
    %cst_20 = arith.constant dense<0.000000e+00> : vector<8x128xf32>
    %30 = tpu.matmul %28, %29, %cst_20 {dimension_numbers = #tpu.dot_dimension_numbers<[1], [0], [0], [1], [0, 0, 1, 1], [], []>} : vector<8x128xbf16>, vector<128x128xbf16>, vector<8x128xf32> -> vector<8x128xf32>
    %c0_21 = arith.constant 0 : index
    %c0_22 = arith.constant 0 : index
    %31 = vector.load %arg9[%c0_21, %c0_22] : memref<1x128xf32, #tpu.memory_space<vmem>>, vector<1x128xf32>
    %32 = vector.broadcast %31 : vector<1x128xf32> to vector<8x128xf32>
    %33 = arith.addf %30, %32 : vector<8x128xf32>
    %cst_23 = arith.constant 0.00999999977 : f32
    %34 = vector.broadcast %cst_23 : f32 to vector<8x128xf32>
    %35 = arith.mulf %34, %33 : vector<8x128xf32>
    %36 = arith.maximumf %33, %35 : vector<8x128xf32>
    %c0_24 = arith.constant 0 : index
    %c0_25 = arith.constant 0 : index
    %37 = vector.load %arg10[%c0_24, %c0_25] : memref<8x128xbf16, #tpu.memory_space<vmem>>, vector<8x128xbf16>
    %38 = arith.truncf %36 : vector<8x128xf32> to vector<8x128xbf16>
    %cst_26 = arith.constant dense<0.000000e+00> : vector<8x8xf32>
    %39 = tpu.matmul %37, %38, %cst_26 {dimension_numbers = #tpu.dot_dimension_numbers<[1], [1], [0], [0], [0, 0, 1, 0], [], []>} : vector<8x128xbf16>, vector<8x128xbf16>, vector<8x8xf32> -> vector<8x8xf32>
    %40 = vector.extract_strided_slice %39 {offsets = [0, 0], sizes = [1, 8], strides = [1, 1]} : vector<8x8xf32> to vector<1x8xf32>
    %c0_27 = arith.constant 0 : index
    %c0_28 = arith.constant 0 : index
    %41 = vector.load %arg11[%c0_27, %c0_28] : memref<1x1xf32, #tpu.memory_space<vmem>>, vector<1x1xf32>
    %42 = vector.broadcast %41 : vector<1x1xf32> to vector<1x8xf32>
    %43 = arith.addf %40, %42 : vector<1x8xf32>
    %c0_29 = arith.constant 0 : index
    %c0_30 = arith.constant 0 : index
    %c0_31 = arith.constant 0 : index
    %44 = vector.load %arg12[%c0_29, %c0_30, %c0_31] : memref<1x1x8xf32, #tpu.memory_space<vmem>>, vector<1x1x8xf32>
    %45 = vector.shape_cast %44 : vector<1x1x8xf32> to vector<1x8xf32>
    %46 = vector.shape_cast %43 : vector<1x8xf32> to vector<1x1x8xf32>
    tpu.vector_store %arg12[%c0_29, %c0_30, %c0_31], %46 {strides = array<i32>} : memref<1x1x8xf32, #tpu.memory_space<vmem>>, vector<1x1x8xf32>,
    return
  }
  func.func @transform_0(%arg0: i32) -> (i32, i32) {
    %c0_i32 = arith.constant 0 : i32
    %c0_i32_0 = arith.constant 0 : i32
    return %arg0, %c0_i32 : i32, i32
  }
  func.func @transform_1(%arg0: i32) -> (i32, i32) {
    %c0_i32 = arith.constant 0 : i32
    %c0_i32_0 = arith.constant 0 : i32
    %c0_i32_1 = arith.constant 0 : i32
    return %c0_i32, %c0_i32_0 : i32, i32
  }
  func.func @transform_2(%arg0: i32) -> (i32, i32) {
    %c0_i32 = arith.constant 0 : i32
    %c0_i32_0 = arith.constant 0 : i32
    %c0_i32_1 = arith.constant 0 : i32
    return %c0_i32, %c0_i32_0 : i32, i32
  }
  func.func @transform_3(%arg0: i32) -> (i32, i32) {
    %c0_i32 = arith.constant 0 : i32
    %c0_i32_0 = arith.constant 0 : i32
    %c0_i32_1 = arith.constant 0 : i32
    return %c0_i32, %c0_i32_0 : i32, i32
  }
  func.func @transform_4(%arg0: i32) -> (i32, i32) {
    %c0_i32 = arith.constant 0 : i32
    %c0_i32_0 = arith.constant 0 : i32
    %c0_i32_1 = arith.constant 0 : i32
    return %c0_i32, %c0_i32_0 : i32, i32
  }
  func.func @transform_5(%arg0: i32) -> (i32, i32) {
    %c0_i32 = arith.constant 0 : i32
    %c0_i32_0 = arith.constant 0 : i32
    %c0_i32_1 = arith.constant 0 : i32
    return %c0_i32, %c0_i32_0 : i32, i32
  }
  func.func @transform_6(%arg0: i32) -> (i32, i32) {
    %c0_i32 = arith.constant 0 : i32
    %c0_i32_0 = arith.constant 0 : i32
    %c0_i32_1 = arith.constant 0 : i32
    return %c0_i32, %c0_i32_0 : i32, i32
  }
  func.func @transform_7(%arg0: i32) -> (i32, i32) {
    %c0_i32 = arith.constant 0 : i32
    %c0_i32_0 = arith.constant 0 : i32
    %c0_i32_1 = arith.constant 0 : i32
    return %c0_i32, %c0_i32_0 : i32, i32
  }
  func.func @transform_8(%arg0: i32) -> (i32, i32) {
    %c0_i32 = arith.constant 0 : i32
    %c0_i32_0 = arith.constant 0 : i32
    %c0_i32_1 = arith.constant 0 : i32
    return %c0_i32, %c0_i32_0 : i32, i32
  }
  func.func @transform_9(%arg0: i32) -> (i32, i32) {
    %c0_i32 = arith.constant 0 : i32
    %c0_i32_0 = arith.constant 0 : i32
    %c0_i32_1 = arith.constant 0 : i32
    return %c0_i32, %c0_i32_0 : i32, i32
  }
  func.func @transform_10(%arg0: i32) -> (i32, i32) {
    %c0_i32 = arith.constant 0 : i32
    %c0_i32_0 = arith.constant 0 : i32
    %c0_i32_1 = arith.constant 0 : i32
    return %c0_i32, %c0_i32_0 : i32, i32
  }
  func.func @transform_11(%arg0: i32) -> (i32, i32, i32) {
    %c0_i32 = arith.constant 0 : i32
    %c0_i32_0 = arith.constant 0 : i32
    %c0_i32_1 = arith.constant 0 : i32
    return %arg0, %c0_i32, %c0_i32_0 : i32, i32, i32
  }
}

</mosaic_0001>

<llo_original>
// kernel: tpu_custom_call.1
$region0: #{tpu_custom_call.1}
  #allocation0 [shape = 'u32[]', space=smem, size = 0x4, offset = 0x4, fixed_abs, tag = 'smem constant byte address 0x4 - core index']
  #allocation1 [shape = 'u32[144,128]{1,0:T(1,128)}', space=vmem, size = 0x12000, scoped, tag = 'internal scratch']
  #allocation2 [shape = 'f32[1,1]{1,0:T(1,128)S(1)}', space=vmem, size = 0x200, scoped, tag = 'scoped memory for tpu_custom_call.1']
  %s0 = inlined_call_operand.hbm [shape: f32[8,16], index: 0, kind: input, shape index: {}]
  %s1 = inlined_call_operand.hbm [shape: bf16[16,128], index: 1, kind: input, shape index: {}]
  %s2 = inlined_call_operand.vmem [shape: f32[1,128], index: 2, kind: input, shape index: {}]
  %s3 = inlined_call_operand.hbm [shape: bf16[128,128], index: 3, kind: input, shape index: {}]
  %s4 = inlined_call_operand.vmem [shape: f32[1,128], index: 4, kind: input, shape index: {}]
  %s5 = inlined_call_operand.hbm [shape: bf16[128,128], index: 5, kind: input, shape index: {}]
  %s6 = inlined_call_operand.vmem [shape: f32[1,128], index: 6, kind: input, shape index: {}]
  %s7 = inlined_call_operand.hbm [shape: bf16[128,128], index: 7, kind: input, shape index: {}]
  %s8 = inlined_call_operand.vmem [shape: f32[1,128], index: 8, kind: input, shape index: {}]
  %s9 = inlined_call_operand.vmem [shape: bf16[8,128], index: 9, kind: input, shape index: {}]
  %s10 = inlined_call_operand.<no memory space> [shape: f32[1,1], index: 10, kind: input, shape index: {}]
  %s11 = inlined_call_operand.hbm [shape: f32[1,1,8], index: 11, kind: output, shape index: {}]
  %s12 = sld [smem:[#allocation0]]
  $region74: #{tpu_custom_call.1} parent=0
    _
  %s14 = ssub.s32 1, %s12
  %s15 = scalar_select 0, %s14, %s12
  %v16 = vstv %s10
  %17 = vst [vmem:[#allocation2] sm:$0x1] %v16
  $region1: #{tpu_custom_call.1} parent=0
    #allocation3 [shape = 'u8[4096]{0}', space=vmem, size = 0x1000, scoped, tag = 'input window, operand 0, single buffered']
    #allocation4 [shape = 's32[1]{0}', space=sflag, size = 0x4, scoped, tag = 'scoped memory for tpu_custom_call.1']
    #allocation5 [shape = 's32[1]{0}', space=sflag, size = 0x4, scoped, tag = 'scoped memory for tpu_custom_call.1']
    #allocation6 [shape = 'u8[4096]{0}', space=vmem, size = 0x1000, scoped, tag = 'input window, operand 1, single buffered']
    #allocation7 [shape = 's32[1]{0}', space=sflag, size = 0x4, scoped, tag = 'scoped memory for tpu_custom_call.1']
    #allocation8 [shape = 'u8[32768]{0}', space=vmem, size = 0x8000, scoped, tag = 'input window, operand 3, single buffered']
    #allocation9 [shape = 'u8[32768]{0}', space=vmem, size = 0x8000, scoped, tag = 'input window, operand 5, single buffered']
    #allocation10 [shape = 's32[1]{0}', space=sflag, size = 0x4, scoped, tag = 'scoped memory for tpu_custom_call.1']
    #allocation11 [shape = 'u8[32768]{0}', space=vmem, size = 0x8000, scoped, tag = 'input window, operand 7, single buffered']
    #allocation12 [shape = 'u8[512]{0}', space=vmem, size = 0x400, scoped, tag = 'output window, operand 0, single buffered']
    %18 = vsyncpa [#allocation4], 0
    %19 = vsyncpa [#allocation7], 0
    %20 = vsyncpa [#allocation10], 0
    %21 = vsyncpa [#allocation5], 0
    // Predicated region
    $region2: #{tpu_custom_call.1} parent=1 // pred_check
      _
    $region3: #{tpu_custom_call.1} parent=1 // pred_check_branch
      %23 = sbr.rel (0) target = $region5
    $region4: #{tpu_custom_call.1} parent=1 // pred_region
      %s25 = ssub.s32 128, 128
      %26 = vsyncadd [#allocation4], %s25
      %s28 = sshll.u32 [#allocation3], 4
      %s29 = int_to_ptr.vmem [resolvable:$true] %s28
      %31 = dma.hbm_to_vmem [thread:$0]  %s0, 128, %s29, [#allocation4]
    $region5: #{tpu_custom_call.1} parent=1 // pred_fallthru
      _
    // Predicated region
    $region6: #{tpu_custom_call.1} parent=1 // pred_check
      _
    $region7: #{tpu_custom_call.1} parent=1 // pred_check_branch
      %33 = sbr.rel (0) target = $region9
    $region8: #{tpu_custom_call.1} parent=1 // pred_region
      %s35 = ssub.s32 128, 128
      %36 = vsyncadd [#allocation7], %s35
      %s37 = sshll.u32 [#allocation6], 4
      %s38 = int_to_ptr.vmem [resolvable:$true] %s37
      %43 = dma.hbm_to_vmem [thread:$0]  %s1, 128, %s38, [#allocation7], 64, 64, 4
    $region9: #{tpu_custom_call.1} parent=1 // pred_fallthru
      _
    // Predicated region
    $region10: #{tpu_custom_call.1} parent=1 // pred_check
      _
    $region11: #{tpu_custom_call.1} parent=1 // pred_check_branch
      %45 = sbr.rel (0) target = $region13
    $region12: #{tpu_custom_call.1} parent=1 // pred_region
      _
    $region13: #{tpu_custom_call.1} parent=1 // pred_fallthru
      _
    // Predicated region
    $region14: #{tpu_custom_call.1} parent=1 // pred_check
      _
    $region15: #{tpu_custom_call.1} parent=1 // pred_check_branch
      %47 = sbr.rel (0) target = $region17
    $region16: #{tpu_custom_call.1} parent=1 // pred_region
      %s49 = ssub.s32 1024, 1024
      %50 = vsyncadd [#allocation7], %s49
      %s51 = sshll.u32 [#allocation8], 4
      %s52 = int_to_ptr.vmem [resolvable:$true] %s51
      %57 = dma.hbm_to_vmem [thread:$0]  %s3, 1024, %s52, [#allocation7], 64, 64, 4
    $region17: #{tpu_custom_call.1} parent=1 // pred_fallthru
      _
    // Predicated region
    $region18: #{tpu_custom_call.1} parent=1 // pred_check
      _
    $region19: #{tpu_custom_call.1} parent=1 // pred_check_branch
      %59 = sbr.rel (0) target = $region21
    $region20: #{tpu_custom_call.1} parent=1 // pred_region
      _
    $region21: #{tpu_custom_call.1} parent=1 // pred_fallthru
      _
    // Predicated region
    $region22: #{tpu_custom_call.1} parent=1 // pred_check
      _
    $region23: #{tpu_custom_call.1} parent=1 // pred_check_branch
      %61 = sbr.rel (0) target = $region25
    $region24: #{tpu_custom_call.1} parent=1 // pred_region
      %s63 = ssub.s32 1024, 1024
      %64 = vsyncadd [#allocation10], %s63
      %s65 = sshll.u32 [#allocation9], 4
      %s66 = int_to_ptr.vmem [resolvable:$true] %s65
      %71 = dma.hbm_to_vmem [thread:$0]  %s5, 1024, %s66, [#allocation10], 64, 64, 4
    $region25: #{tpu_custom_call.1} parent=1 // pred_fallthru
      _
    // Predicated region
    $region26: #{tpu_custom_call.1} parent=1 // pred_check
      _
    $region27: #{tpu_custom_call.1} parent=1 // pred_check_branch
      %73 = sbr.rel (0) target = $region29
    $region28: #{tpu_custom_call.1} parent=1 // pred_region
      _
    $region29: #{tpu_custom_call.1} parent=1 // pred_fallthru
      _
    // Predicated region
    $region30: #{tpu_custom_call.1} parent=1 // pred_check
      _
    $region31: #{tpu_custom_call.1} parent=1 // pred_check_branch
      %75 = sbr.rel (0) target = $region33
    $region32: #{tpu_custom_call.1} parent=1 // pred_region
      %s77 = ssub.s32 1024, 1024
      %78 = vsyncadd [#allocation10], %s77
      %s79 = sshll.u32 [#allocation11], 4
      %s80 = int_to_ptr.vmem [resolvable:$true] %s79
      %85 = dma.hbm_to_vmem [thread:$0]  %s7, 1024, %s80, [#allocation10], 64, 64, 4
    $region33: #{tpu_custom_call.1} parent=1 // pred_fallthru
      _
    // Predicated region
    $region34: #{tpu_custom_call.1} parent=1 // pred_check
      _
    $region35: #{tpu_custom_call.1} parent=1 // pred_check_branch
      %87 = sbr.rel (0) target = $region37
    $region36: #{tpu_custom_call.1} parent=1 // pred_region
      _
    $region37: #{tpu_custom_call.1} parent=1 // pred_fallthru
      _
    // Predicated region
    $region38: #{tpu_custom_call.1} parent=1 // pred_check
      _
    $region39: #{tpu_custom_call.1} parent=1 // pred_check_branch
      %89 = sbr.rel (0) target = $region41
    $region40: #{tpu_custom_call.1} parent=1 // pred_region
      _
    $region41: #{tpu_custom_call.1} parent=1 // pred_fallthru
      _
    // Predicated region
    $region42: #{tpu_custom_call.1} parent=1 // pred_check
      _
    $region43: #{tpu_custom_call.1} parent=1 // pred_check_branch
      %91 = sbr.rel (0) target = $region45
    $region44: #{tpu_custom_call.1} parent=1 // pred_region
      _
    $region45: #{tpu_custom_call.1} parent=1 // pred_fallthru
      _
    // Predicated region
    $region46: #{tpu_custom_call.1} parent=1 // pred_check
      _
    $region47: #{tpu_custom_call.1} parent=1 // pred_check_branch
      %93 = sbr.rel (0) target = $region49
    $region48: #{tpu_custom_call.1} parent=1 // pred_region
      %94 = dma.done [#allocation4], 128
    $region49: #{tpu_custom_call.1} parent=1 // pred_fallthru
      _
    // Predicated region
    $region50: #{tpu_custom_call.1} parent=1 // pred_check
      _
    $region51: #{tpu_custom_call.1} parent=1 // pred_check_branch
      %96 = sbr.rel (0) target = $region53
    $region52: #{tpu_custom_call.1} parent=1 // pred_region
      %97 = dma.done [#allocation7], 128
    $region53: #{tpu_custom_call.1} parent=1 // pred_fallthru
      _
    // Predicated region
    $region54: #{tpu_custom_call.1} parent=1 // pred_check
      _
    $region55: #{tpu_custom_call.1} parent=1 // pred_check_branch
      %99 = sbr.rel (0) target = $region57
    $region56: #{tpu_custom_call.1} parent=1 // pred_region
      %100 = dma.done [#allocation7], 1024
    $region57: #{tpu_custom_call.1} parent=1 // pred_fallthru
      _
    // Predicated region
    $region58: #{tpu_custom_call.1} parent=1 // pred_check
      _
    $region59: #{tpu_custom_call.1} parent=1 // pred_check_branch
      %102 = sbr.rel (0) target = $region61
    $region60: #{tpu_custom_call.1} parent=1 // pred_region
      %103 = dma.done [#allocation10], 1024
    $region61: #{tpu_custom_call.1} parent=1 // pred_fallthru
      _
    // Predicated region
    $region62: #{tpu_custom_call.1} parent=1 // pred_check
      _
    $region63: #{tpu_custom_call.1} parent=1 // pred_check_branch
      %105 = sbr.rel (0) target = $region65
    $region64: #{tpu_custom_call.1} parent=1 // pred_region
      %106 = dma.done [#allocation10], 1024
    $region65: #{tpu_custom_call.1} parent=1 // pred_fallthru
      _
    %v108 = vld [vmem:[#allocation3] sm:$0xff]
    %v109 = vpack.c.bf16 %v108, %v108
    %v110 = vld [vmem:[#allocation6] sm:$0xf]
    %v111 = vld [vmem:[#allocation6 + $0x4] sm:$0xf]
    %v112 = vld [vmem:[%s2] sm:$0x1]
    %v114 = vlaneseq
    %v115 = vshrl.u32 %v114, 7
    %v116 = vsub.s32 0, %v115
    %v117 = vrot.slane %v112, %v116
    %v121 = vunpack.c.l.b16 %v110
    %v122 = vunpack.c.l.b16 %v111
    %v123 = vpack.c.b16 %v122, %v121
    %vm125 = vcmask 130048
    %v127 = vsel %vm125, %v109, 0
    %129 = vmatprep.subr.bf16.mxu0 0
    %130 = vmatpush1.bf16.msra.mxu0 %v123
    %131 = vmatprep.subr.bf16.mxu0 0
    %132 = vmatpush1.bf16.msra.mxu0 0
    %133 = vmatprep.subr.bf16.mxu0 0
    %134 = vmatpush1.bf16.msra.mxu0 0
    %135 = vmatprep.subr.bf16.mxu0 0
    %136 = vmatpush1.bf16.msra.mxu0 0
    %137 = vmatprep.subr.bf16.mxu0 0
    %138 = vmatpush1.bf16.msra.mxu0 0
    %139 = vmatprep.subr.bf16.mxu0 0
    %140 = vmatpush1.bf16.msra.mxu0 0
    %141 = vmatprep.subr.bf16.mxu0 0
    %142 = vmatpush1.bf16.msra.mxu0 0
    %143 = vmatprep.subr.bf16.mxu0 0
    %144 = vmatpush1.bf16.msra.mxu0 0
    %145 = vmatprep.subr.bf16.mxu0 0
    %146 = vmatpush1.bf16.msra.mxu0 0
    %147 = vmatprep.subr.bf16.mxu0 0
    %148 = vmatpush1.bf16.msra.mxu0 0
    %149 = vmatprep.subr.bf16.mxu0 0
    %150 = vmatpush1.bf16.msra.mxu0 0
    %151 = vmatprep.subr.bf16.mxu0 0
    %152 = vmatpush1.bf16.msra.mxu0 0
    %153 = vmatprep.subr.bf16.mxu0 0
    %154 = vmatpush1.bf16.msra.mxu0 0
    %155 = vmatprep.subr.bf16.mxu0 0
    %156 = vmatpush1.bf16.msra.mxu0 0
    %157 = vmatprep.subr.bf16.mxu0 0
    %158 = vmatpush1.bf16.msra.mxu0 0
    %159 = vmatprep.subr.bf16.mxu0 0
    %160 = vmatpush1.bf16.msra.mxu0 0
    %161 = vmatprep.mubr.bf16.mxu0 0
    %162 = vmatmul.mubr.bf16.gmra.mrb[0].mxu0 %v127
    %v163 = vpop.f32.mrb[0].mxu0
    %v164 = vadd.f32 %v117, %v163
    %v165 = vpop.f32.mrb[0].mxu0
    %v166 = vpop.f32.mrb[0].mxu0
    %v167 = vpop.f32.mrb[0].mxu0
    %168 = vdwg.mxu0
    %v169 = vmul.f32 %v164, 0.01
    %v170 = vmax.f32 %v164, %v169
    %v171 = vpack.c.bf16 %v170, %v170
    %v172 = vld [vmem:[#allocation8] sm:$0xf]
    %v173 = vld [vmem:[#allocation8 + $0x4] sm:$0xf]
    %v174 = vld [vmem:[#allocation8 + $0x8] sm:$0xf]
    %v175 = vld [vmem:[#allocation8 + $0xc] sm:$0xf]
    %v176 = vld [vmem:[#allocation8 + $0x10] sm:$0xf]
    %v177 = vld [vmem:[#allocation8 + $0x14] sm:$0xf]
    %v178 = vld [vmem:[#allocation8 + $0x18] sm:$0xf]
    %v179 = vld [vmem:[#allocation8 + $0x1c] sm:$0xf]
    %v180 = vld [vmem:[#allocation8 + $0x20] sm:$0xf]
    %v181 = vld [vmem:[#allocation8 + $0x24] sm:$0xf]
    %v182 = vld [vmem:[#allocation8 + $0x28] sm:$0xf]
    %v183 = vld [vmem:[#allocation8 + $0x2c] sm:$0xf]
    %v184 = vld [vmem:[#allocation8 + $0x30] sm:$0xf]
    %v185 = vld [vmem:[#allocation8 + $0x34] sm:$0xf]
    %v186 = vld [vmem:[#allocation8 + $0x38] sm:$0xf]
    %v187 = vld [vmem:[#allocation8 + $0x3c] sm:$0xf]
    %v188 = vld [vmem:[%s4] sm:$0x1]
    %v190 = vlaneseq
    %v191 = vshrl.u32 %v190, 7
    %v192 = vsub.s32 0, %v191
    %v193 = vrot.slane %v188, %v192
    %v211 = vunpack.c.l.b16 %v172
    %v212 = vunpack.c.l.b16 %v173
    %v213 = vunpack.c.l.b16 %v174
    %v214 = vunpack.c.l.b16 %v175
    %v215 = vunpack.c.l.b16 %v176
    %v216 = vunpack.c.l.b16 %v177
    %v217 = vunpack.c.l.b16 %v178
    %v218 = vunpack.c.l.b16 %v179
    %v219 = vunpack.c.l.b16 %v180
    %v220 = vunpack.c.l.b16 %v181
    %v221 = vunpack.c.l.b16 %v182
    %v222 = vunpack.c.l.b16 %v183
    %v223 = vunpack.c.l.b16 %v184
    %v224 = vunpack.c.l.b16 %v185
    %v225 = vunpack.c.l.b16 %v186
    %v226 = vunpack.c.l.b16 %v187
    %v227 = vpack.c.b16 %v212, %v211
    %v228 = vpack.c.b16 %v214, %v213
    %v229 = vpack.c.b16 %v216, %v215
    %v230 = vpack.c.b16 %v218, %v217
    %v231 = vpack.c.b16 %v220, %v219
    %v232 = vpack.c.b16 %v222, %v221
    %v233 = vpack.c.b16 %v224, %v223
    %v234 = vpack.c.b16 %v226, %v225
    %243 = vmatprep.subr.bf16.mxu0 0
    %244 = vmatpush1.bf16.msra.mxu0 %v227
    %245 = vmatprep.subr.bf16.mxu0 0
    %246 = vmatpush1.bf16.msra.mxu0 %v228
    %247 = vmatprep.subr.bf16.mxu0 0
    %248 = vmatpush1.bf16.msra.mxu0 %v229
    %249 = vmatprep.subr.bf16.mxu0 0
    %250 = vmatpush1.bf16.msra.mxu0 %v230
    %251 = vmatprep.subr.bf16.mxu0 0
    %252 = vmatpush1.bf16.msra.mxu0 %v231
    %253 = vmatprep.subr.bf16.mxu0 0
    %254 = vmatpush1.bf16.msra.mxu0 %v232
    %255 = vmatprep.subr.bf16.mxu0 0
    %256 = vmatpush1.bf16.msra.mxu0 %v233
    %257 = vmatprep.subr.bf16.mxu0 0
    %258 = vmatpush1.bf16.msra.mxu0 %v234
    %259 = vmatprep.subr.bf16.mxu0 0
    %260 = vmatpush1.bf16.msra.mxu0 0
    %261 = vmatprep.subr.bf16.mxu0 0
    %262 = vmatpush1.bf16.msra.mxu0 0
    %263 = vmatprep.subr.bf16.mxu0 0
    %264 = vmatpush1.bf16.msra.mxu0 0
    %265 = vmatprep.subr.bf16.mxu0 0
    %266 = vmatpush1.bf16.msra.mxu0 0
    %267 = vmatprep.subr.bf16.mxu0 0
    %268 = vmatpush1.bf16.msra.mxu0 0
    %269 = vmatprep.subr.bf16.mxu0 0
    %270 = vmatpush1.bf16.msra.mxu0 0
    %271 = vmatprep.subr.bf16.mxu0 0
    %272 = vmatpush1.bf16.msra.mxu0 0
    %273 = vmatprep.subr.bf16.mxu0 0
    %274 = vmatpush1.bf16.msra.mxu0 0
    %275 = vmatprep.mubr.bf16.mxu0 0
    %276 = vmatmul.mubr.bf16.gmra.mrb[0].mxu0 %v171
    %v277 = vpop.f32.mrb[0].mxu0
    %v278 = vadd.f32 %v193, %v277
    %v279 = vpop.f32.mrb[0].mxu0
    %v280 = vpop.f32.mrb[0].mxu0
    %v281 = vpop.f32.mrb[0].mxu0
    %282 = vdwg.mxu0
    %v283 = vmul.f32 %v278, 0.01
    %v284 = vmax.f32 %v278, %v283
    %v285 = vpack.c.bf16 %v284, %v284
    %v286 = vld [vmem:[#allocation9] sm:$0xf]
    %v287 = vld [vmem:[#allocation9 + $0x4] sm:$0xf]
    %v288 = vld [vmem:[#allocation9 + $0x8] sm:$0xf]
    %v289 = vld [vmem:[#allocation9 + $0xc] sm:$0xf]
    %v290 = vld [vmem:[#allocation9 + $0x10] sm:$0xf]
    %v291 = vld [vmem:[#allocation9 + $0x14] sm:$0xf]
    %v292 = vld [vmem:[#allocation9 + $0x18] sm:$0xf]
    %v293 = vld [vmem:[#allocation9 + $0x1c] sm:$0xf]
    %v294 = vld [vmem:[#allocation9 + $0x20] sm:$0xf]
    %v295 = vld [vmem:[#allocation9 + $0x24] sm:$0xf]
    %v296 = vld [vmem:[#allocation9 + $0x28] sm:$0xf]
    %v297 = vld [vmem:[#allocation9 + $0x2c] sm:$0xf]
    %v298 = vld [vmem:[#allocation9 + $0x30] sm:$0xf]
    %v299 = vld [vmem:[#allocation9 + $0x34] sm:$0xf]
    %v300 = vld [vmem:[#allocation9 + $0x38] sm:$0xf]
    %v301 = vld [vmem:[#allocation9 + $0x3c] sm:$0xf]
    %v302 = vld [vmem:[%s6] sm:$0x1]
    %v304 = vlaneseq
    %v305 = vshrl.u32 %v304, 7
    %v306 = vsub.s32 0, %v305
    %v307 = vrot.slane %v302, %v306
    %v325 = vunpack.c.l.b16 %v286
    %v326 = vunpack.c.l.b16 %v287
    %v327 = vunpack.c.l.b16 %v288
    %v328 = vunpack.c.l.b16 %v289
    %v329 = vunpack.c.l.b16 %v290
    %v330 = vunpack.c.l.b16 %v291
    %v331 = vunpack.c.l.b16 %v292
    %v332 = vunpack.c.l.b16 %v293
    %v333 = vunpack.c.l.b16 %v294
    %v334 = vunpack.c.l.b16 %v295
    %v335 = vunpack.c.l.b16 %v296
    %v336 = vunpack.c.l.b16 %v297
    %v337 = vunpack.c.l.b16 %v298
    %v338 = vunpack.c.l.b16 %v299
    %v339 = vunpack.c.l.b16 %v300
    %v340 = vunpack.c.l.b16 %v301
    %v341 = vpack.c.b16 %v326, %v325
    %v342 = vpack.c.b16 %v328, %v327
    %v343 = vpack.c.b16 %v330, %v329
    %v344 = vpack.c.b16 %v332, %v331
    %v345 = vpack.c.b16 %v334, %v333
    %v346 = vpack.c.b16 %v336, %v335
    %v347 = vpack.c.b16 %v338, %v337
    %v348 = vpack.c.b16 %v340, %v339
    %357 = vmatprep.subr.bf16.mxu0 0
    %358 = vmatpush1.bf16.msra.mxu0 %v341
    %359 = vmatprep.subr.bf16.mxu0 0
    %360 = vmatpush1.bf16.msra.mxu0 %v342
    %361 = vmatprep.subr.bf16.mxu0 0
    %362 = vmatpush1.bf16.msra.mxu0 %v343
    %363 = vmatprep.subr.bf16.mxu0 0
    %364 = vmatpush1.bf16.msra.mxu0 %v344
    %365 = vmatprep.subr.bf16.mxu0 0
    %366 = vmatpush1.bf16.msra.mxu0 %v345
    %367 = vmatprep.subr.bf16.mxu0 0
    %368 = vmatpush1.bf16.msra.mxu0 %v346
    %369 = vmatprep.subr.bf16.mxu0 0
    %370 = vmatpush1.bf16.msra.mxu0 %v347
    %371 = vmatprep.subr.bf16.mxu0 0
    %372 = vmatpush1.bf16.msra.mxu0 %v348
    %373 = vmatprep.subr.bf16.mxu0 0
    %374 = vmatpush1.bf16.msra.mxu0 0
    %375 = vmatprep.subr.bf16.mxu0 0
    %376 = vmatpush1.bf16.msra.mxu0 0
    %377 = vmatprep.subr.bf16.mxu0 0
    %378 = vmatpush1.bf16.msra.mxu0 0
    %379 = vmatprep.subr.bf16.mxu0 0
    %380 = vmatpush1.bf16.msra.mxu0 0
    %381 = vmatprep.subr.bf16.mxu0 0
    %382 = vmatpush1.bf16.msra.mxu0 0
    %383 = vmatprep.subr.bf16.mxu0 0
    %384 = vmatpush1.bf16.msra.mxu0 0
    %385 = vmatprep.subr.bf16.mxu0 0
    %386 = vmatpush1.bf16.msra.mxu0 0
    %387 = vmatprep.subr.bf16.mxu0 0
    %388 = vmatpush1.bf16.msra.mxu0 0
    %389 = vmatprep.mubr.bf16.mxu0 0
    %390 = vmatmul.mubr.bf16.gmra.mrb[0].mxu0 %v285
    %v391 = vpop.f32.mrb[0].mxu0
    %v392 = vadd.f32 %v307, %v391
    %v393 = vpop.f32.mrb[0].mxu0
    %v394 = vpop.f32.mrb[0].mxu0
    %v395 = vpop.f32.mrb[0].mxu0
    %396 = vdwg.mxu0
    %v397 = vmul.f32 %v392, 0.01
    %v398 = vmax.f32 %v392, %v397
    %v399 = vpack.c.bf16 %v398, %v398
    %v400 = vld [vmem:[#allocation11] sm:$0xf]
    %v401 = vld [vmem:[#allocation11 + $0x4] sm:$0xf]
    %v402 = vld [vmem:[#allocation11 + $0x8] sm:$0xf]
    %v403 = vld [vmem:[#allocation11 + $0xc] sm:$0xf]
    %v404 = vld [vmem:[#allocation11 + $0x10] sm:$0xf]
    %v405 = vld [vmem:[#allocation11 + $0x14] sm:$0xf]
    %v406 = vld [vmem:[#allocation11 + $0x18] sm:$0xf]
    %v407 = vld [vmem:[#allocation11 + $0x1c] sm:$0xf]
    %v408 = vld [vmem:[#allocation11 + $0x20] sm:$0xf]
    %v409 = vld [vmem:[#allocation11 + $0x24] sm:$0xf]
    %v410 = vld [vmem:[#allocation11 + $0x28] sm:$0xf]
    %v411 = vld [vmem:[#allocation11 + $0x2c] sm:$0xf]
    %v412 = vld [vmem:[#allocation11 + $0x30] sm:$0xf]
    %v413 = vld [vmem:[#allocation11 + $0x34] sm:$0xf]
    %v414 = vld [vmem:[#allocation11 + $0x38] sm:$0xf]
    %v415 = vld [vmem:[#allocation11 + $0x3c] sm:$0xf]
    %v416 = vld [vmem:[%s8] sm:$0x1]
    %v418 = vlaneseq
    %v419 = vshrl.u32 %v418, 7
    %v420 = vsub.s32 0, %v419
    %v421 = vrot.slane %v416, %v420
    %v439 = vunpack.c.l.b16 %v400
    %v440 = vunpack.c.l.b16 %v401
    %v441 = vunpack.c.l.b16 %v402
    %v442 = vunpack.c.l.b16 %v403
    %v443 = vunpack.c.l.b16 %v404
    %v444 = vunpack.c.l.b16 %v405
    %v445 = vunpack.c.l.b16 %v406
    %v446 = vunpack.c.l.b16 %v407
    %v447 = vunpack.c.l.b16 %v408
    %v448 = vunpack.c.l.b16 %v409
    %v449 = vunpack.c.l.b16 %v410
    %v450 = vunpack.c.l.b16 %v411
    %v451 = vunpack.c.l.b16 %v412
    %v452 = vunpack.c.l.b16 %v413
    %v453 = vunpack.c.l.b16 %v414
    %v454 = vunpack.c.l.b16 %v415
    %v455 = vpack.c.b16 %v440, %v439
    %v456 = vpack.c.b16 %v442, %v441
    %v457 = vpack.c.b16 %v444, %v443
    %v458 = vpack.c.b16 %v446, %v445
    %v459 = vpack.c.b16 %v448, %v447
    %v460 = vpack.c.b16 %v450, %v449
    %v461 = vpack.c.b16 %v452, %v451
    %v462 = vpack.c.b16 %v454, %v453
    %471 = vmatprep.subr.bf16.mxu0 0
    %472 = vmatpush1.bf16.msra.mxu0 %v455
    %473 = vmatprep.subr.bf16.mxu0 0
    %474 = vmatpush1.bf16.msra.mxu0 %v456
    %475 = vmatprep.subr.bf16.mxu0 0
    %476 = vmatpush1.bf16.msra.mxu0 %v457
    %477 = vmatprep.subr.bf16.mxu0 0
    %478 = vmatpush1.bf16.msra.mxu0 %v458
    %479 = vmatprep.subr.bf16.mxu0 0
    %480 = vmatpush1.bf16.msra.mxu0 %v459
    %481 = vmatprep.subr.bf16.mxu0 0
    %482 = vmatpush1.bf16.msra.mxu0 %v460
    %483 = vmatprep.subr.bf16.mxu0 0
    %484 = vmatpush1.bf16.msra.mxu0 %v461
    %485 = vmatprep.subr.bf16.mxu0 0
    %486 = vmatpush1.bf16.msra.mxu0 %v462
    %487 = vmatprep.subr.bf16.mxu0 0
    %488 = vmatpush1.bf16.msra.mxu0 0
    %489 = vmatprep.subr.bf16.mxu0 0
    %490 = vmatpush1.bf16.msra.mxu0 0
    %491 = vmatprep.subr.bf16.mxu0 0
    %492 = vmatpush1.bf16.msra.mxu0 0
    %493 = vmatprep.subr.bf16.mxu0 0
    %494 = vmatpush1.bf16.msra.mxu0 0
    %495 = vmatprep.subr.bf16.mxu0 0
    %496 = vmatpush1.bf16.msra.mxu0 0
    %497 = vmatprep.subr.bf16.mxu0 0
    %498 = vmatpush1.bf16.msra.mxu0 0
    %499 = vmatprep.subr.bf16.mxu0 0
    %500 = vmatpush1.bf16.msra.mxu0 0
    %501 = vmatprep.subr.bf16.mxu0 0
    %502 = vmatpush1.bf16.msra.mxu0 0
    %503 = vmatprep.mubr.bf16.mxu0 0
    %504 = vmatmul.mubr.bf16.gmra.mrb[0].mxu0 %v399
    %v505 = vpop.f32.mrb[0].mxu0
    %v506 = vadd.f32 %v421, %v505
    %v507 = vpop.f32.mrb[0].mxu0
    %v508 = vpop.f32.mrb[0].mxu0
    %v509 = vpop.f32.mrb[0].mxu0
    %510 = vdwg.mxu0
    %v511 = vmul.f32 %v506, 0.01
    %v512 = vmax.f32 %v506, %v511
    %v513 = vld [vmem:[%s9] sm:$0xf]
    %v514 = vpack.c.bf16 %v512, %v512
    %515 = vmatprep.subr.bf16.mxu0 0
    %516 = vmatpush1.bf16.xpose.msra.mxu0 %v514
    %517 = vmatprep.subr.bf16.mxu0 0
    %518 = vmatpush1.bf16.xpose.msra.mxu0 0
    %519 = vmatprep.subr.bf16.mxu0 0
    %520 = vmatpush1.bf16.xpose.msra.mxu0 0
    %521 = vmatprep.subr.bf16.mxu0 0
    %522 = vmatpush1.bf16.xpose.msra.mxu0 0
    %523 = vmatprep.subr.bf16.mxu0 0
    %524 = vmatpush1.bf16.xpose.msra.mxu0 0
    %525 = vmatprep.subr.bf16.mxu0 0
    %526 = vmatpush1.bf16.xpose.msra.mxu0 0
    %527 = vmatprep.subr.bf16.mxu0 0
    %528 = vmatpush1.bf16.xpose.msra.mxu0 0
    %529 = vmatprep.subr.bf16.mxu0 0
    %530 = vmatpush1.bf16.xpose.msra.mxu0 0
    %531 = vmatprep.subr.bf16.mxu0 0
    %532 = vmatpush1.bf16.xpose.msra.mxu0 0
    %533 = vmatprep.subr.bf16.mxu0 0
    %534 = vmatpush1.bf16.xpose.msra.mxu0 0
    %535 = vmatprep.subr.bf16.mxu0 0
    %536 = vmatpush1.bf16.xpose.msra.mxu0 0
    %537 = vmatprep.subr.bf16.mxu0 0
    %538 = vmatpush1.bf16.xpose.msra.mxu0 0
    %539 = vmatprep.subr.bf16.mxu0 0
    %540 = vmatpush1.bf16.xpose.msra.mxu0 0
    %541 = vmatprep.subr.bf16.mxu0 0
    %542 = vmatpush1.bf16.xpose.msra.mxu0 0
    %543 = vmatprep.subr.bf16.mxu0 0
    %544 = vmatpush1.bf16.xpose.msra.mxu0 0
    %545 = vmatprep.subr.bf16.mxu0 0
    %546 = vmatpush1.bf16.xpose.msra.mxu0 0
    %547 = vmatprep.mubr.bf16.mxu0 0
    %548 = vmatmul.mubr.bf16.gmra.mrb[0].mxu0 %v513
    %v549 = vpop.f32.mrb[0].mxu0
    %v550 = vadd.f32 0.0, %v549
    %v551 = vpop.f32.mrb[0].mxu0
    %v552 = vpop.f32.mrb[0].mxu0
    %v553 = vpop.f32.mrb[0].mxu0
    %554 = vdwg.mxu0
    %v555 = vld [vmem:[#allocation2] sm:$0x1]
    %557 = vset.pattern.permute.xlu0 0
    %558 = vperm.xlu0 %557, %v555
    %v559 = vpop.permute.xlu0 %558
    %v561 = vlaneseq
    %v562 = vshrl.u32 %v561, 7
    %v563 = vsub.s32 0, %v562
    %v564 = vrot.slane %v559, %v563
    %v565 = vadd.f32 %v550, %v564
    %vm566 = vcmask 57344
    %567 = vst.msk [vmem:[#allocation12] sm:$0x1] %vm566, %v565
    // Predicated region
    $region66: #{tpu_custom_call.1} parent=1 // pred_check
      _
    $region67: #{tpu_custom_call.1} parent=1 // pred_check_branch
      %569 = sbr.rel (0) target = $region69
    $region68: #{tpu_custom_call.1} parent=1 // pred_region
      %s571 = ssub.s32 16, 16
      %572 = vsyncadd [#allocation5], %s571
      %s574 = sshll.u32 [#allocation12], 4
      %s575 = int_to_ptr.vmem [resolvable:$true] %s574
      %577 = dma.vmem_to_hbm [thread:$0]  %s575, 16, %s11, [#allocation5]
    $region69: #{tpu_custom_call.1} parent=1 // pred_fallthru
      _
    // Predicated region
    $region70: #{tpu_custom_call.1} parent=1 // pred_check
      _
    $region71: #{tpu_custom_call.1} parent=1 // pred_check_branch
      %579 = sbr.rel (0) target = $region73
    $region72: #{tpu_custom_call.1} parent=1 // pred_region
      %580 = dma.done [#allocation5], 16
    $region73: #{tpu_custom_call.1} parent=1 // pred_fallthru
      _
    %581 = vsyncpa [#allocation4], 1
    %582 = vsyncpa [#allocation7], 1
    %583 = vsyncpa [#allocation10], 1
    %584 = vsyncpa [#allocation5], 1

</llo_original>
